<compile_context>
chip_gen: v5e
topology: v5e:2x2
jax: 0.10.0
libtpu: 0.0.40
codegen_flags: <defaults>
</compile_context>

<pallas_src>
import functools

import jax
import jax.numpy as jnp
from jax.experimental import pallas as pl
from jax.experimental.pallas import tpu as pltpu


def _mlp_cat_kernel(num_layers, tile_n, *refs):
    """refs = (xi, xj, w0_sym, w0_asym, b0, w1, b1, ..., w_last, b_last, out)."""
    xi_ref, xj_ref = refs[0], refs[1]
    ws_ref, wd_ref, b0_ref = refs[2], refs[3], refs[4]
    layer_refs = refs[5:5 + 2 * (num_layers - 1)]
    out_ref = refs[-1]

    xi = xi_ref[...]
    xj = xj_ref[...]
    ws = ws_ref[...]
    b0 = b0_ref[...].astype(jnp.float32)

    # Symmetric part: shared by both concat orders (one matmul serves both).
    s = (xi + xj).astype(ws.dtype)
    u = jnp.dot(s, ws, preferred_element_type=jnp.float32)

    if num_layers == 1:
        # Entire module is linear: (h1 + h2) / 2 == s @ Ws + b0.
        out_ref[...] = (u + b0).astype(out_ref.dtype)
        return

    # Antisymmetric part: the only thing that differs between the two orders.
    wd = wd_ref[...]
    d = (xi - xj).astype(wd.dtype)
    v = jnp.dot(d, wd, preferred_element_type=jnp.float32)

    a1 = jnp.maximum(u + v + b0, 0.0)        # relu(lin0([xi|xj]))
    a2 = jnp.maximum(u - v + b0, 0.0)        # relu(lin0([xj|xi]))
    # TODO(synk): dropout is identity in eval mode; training-mode dropout would
    # use pltpu.prng_seed + pltpu.prng_random_bits here.

    if num_layers > 2:
        # Middle layers: stack both concat orders along the row (sublane) axis
        # so layers 1..L-2 run one matmul chain with 2*tile_n rows on the MXU.
        x = jnp.concatenate([a1, a2], axis=0)
        for layer in range(1, num_layers - 1):
            w = layer_refs[2 * (layer - 1)][...]                       # [in, out]
            b = layer_refs[2 * (layer - 1) + 1][...].astype(jnp.float32)
            x = jnp.maximum(
                jnp.dot(x.astype(w.dtype), w, preferred_element_type=jnp.float32) + b,
                0.0)
        a1, a2 = x[:tile_n, :], x[tile_n:, :]

    # Last layer is linear -> average first, then one matmul on tile_n rows.
    w_last = layer_refs[-2][...]
    b_last = layer_refs[-1][...].astype(jnp.float32)
    avg = ((a1 + a2) * 0.5).astype(w_last.dtype)
    out = jnp.dot(avg, w_last, preferred_element_type=jnp.float32) + b_last
    out_ref[...] = out.astype(out_ref.dtype)


def _choose_tile_n(n):
    """Large row tiles (better MXU/DMA utilisation), but keep >=2 grid steps
    when N allows so the row axis can shard across v7x's two TensorCores."""
    tile = min(n, 512)
    while tile > 8 and (n % tile != 0 or n // tile < 2):
        tile //= 2
    return max(tile, 8)


def mlp_cat_predictor(x_i, x_j, weights, biases, *, tile_n=None):
    """Pallas forward of MLPCatPredictor (eval mode).

    x_i, x_j:   [N, in_channels]
    weights[l]: [in_l, out_l]  (transposed PyTorch nn.Linear layout)
    biases[l]:  [1, out_l]
    """
    assert x_i.shape == x_j.shape
    n, c = x_i.shape
    assert n % 8 == 0, "N must be a multiple of 8 (sublane granularity)"
    num_layers = len(weights)
    out_channels = weights[-1].shape[1]

    if tile_n is None:
        tile_n = _choose_tile_n(n)
    assert n % tile_n == 0 and tile_n % 8 == 0

    weights = list(weights)
    biases = list(biases)

    # Lane-dense output: zero-pad the last layer's output dim to a multiple of
    # 128 so the writeback uses full-lane (unmasked) stores; slice pad off below.
    out_pad = ((out_channels + 127) // 128) * 128
    if out_pad != out_channels:
        weights[-1] = jnp.pad(weights[-1], ((0, 0), (0, out_pad - out_channels)))
        biases[-1] = jnp.pad(biases[-1], ((0, 0), (0, out_pad - out_channels)))

    # Precompute the symmetric / antisymmetric halves of the layer-0 weight so
    # the kernel never concatenates along the lane axis and does only two
    # layer-0 matmuls.
    w0 = weights[0]
    assert w0.shape[0] == 2 * c, "layer 0 expects in_features == 2 * in_channels"
    w0_sym = ((w0[:c, :] + w0[c:, :]) * 0.5).astype(w0.dtype)
    w0_asym = ((w0[:c, :] - w0[c:, :]) * 0.5).astype(w0.dtype)
    b0 = biases[0]

    in_specs = [
        pl.BlockSpec((tile_n, c), lambda i: (i, 0)),          # x_i row tile
        pl.BlockSpec((tile_n, c), lambda i: (i, 0)),          # x_j row tile
        pl.BlockSpec(w0_sym.shape, lambda i: (0, 0)),
        pl.BlockSpec(w0_asym.shape, lambda i: (0, 0)),
        pl.BlockSpec(b0.shape, lambda i: (0, 0)),
    ]
    args = [x_i, x_j, w0_sym, w0_asym, b0]
    for w, b in zip(weights[1:], biases[1:]):
        # Constant index_map -> these are DMA'd into VMEM once, not per row tile.
        in_specs.append(pl.BlockSpec(w.shape, lambda i: (0, 0)))
        in_specs.append(pl.BlockSpec(b.shape, lambda i: (0, 0)))
        args.extend([w, b])

    out_specs = pl.BlockSpec((tile_n, out_pad), lambda i: (i, 0))

    kernel = functools.partial(_mlp_cat_kernel, num_layers, tile_n)
    out_padded = pl.pallas_call(
        kernel,
        out_shape=jax.ShapeDtypeStruct((n, out_pad), x_i.dtype),
        grid_spec=pltpu.PrefetchScalarGridSpec(
            num_scalar_prefetch=0,
            grid=(n // tile_n,),
            in_specs=in_specs,
            out_specs=out_specs,
        ),
        compiler_params=pltpu.CompilerParams(
            dimension_semantics=("parallel",)),
    )(*args)

    return out_padded[:, :out_channels]


def init_params(key, in_channels, hidden_channels, out_channels, num_layers):
    """Deterministic init mirroring nn.Linear's uniform(-1/sqrt(fan_in), ...)."""
    cat_in = 2 * in_channels
    weights, biases = [], []
    for i in range(num_layers):
        fan_in = cat_in if i == 0 else hidden_channels
        fan_out = out_channels if i == num_layers - 1 else hidden_channels
        key, kw, kb = jax.random.split(key, 3)
        bound = 1.0 / float(fan_in) ** 0.5
        # Stored as [in, out] so the kernel does x @ w + b.
        w = jax.random.uniform(kw, (fan_in, fan_out), jnp.float32, -bound, bound)
        b = jax.random.uniform(kb, (1, fan_out), jnp.float32, -bound, bound)
        weights.append(w)
        biases.append(b)
    return weights, biases


def _reference(x_i, x_j, weights, biases):
    """Pure-JAX reference of the PyTorch forward (eval mode)."""
    x1 = jnp.concatenate([x_i, x_j], axis=-1)
    x2 = jnp.concatenate([x_j, x_i], axis=-1)
    num_layers = len(weights)
    for l in range(num_layers - 1):
        x1 = jax.nn.relu(x1 @ weights[l] + biases[l])
        x2 = jax.nn.relu(x2 @ weights[l] + biases[l])
    x1 = x1 @ weights[-1] + biases[-1]
    x2 = x2 @ weights[-1] + biases[-1]
    return (x1 + x2) / 2.0


if __name__ == "__main__":
    # Small shapes: N=16 node pairs, in_channels=16 (cat -> 32), hidden=32,
    # out=8, num_layers=3, dropout=0.5 (identity in eval).
    N, IN_C, HID_C, OUT_C, NUM_LAYERS = 16, 16, 32, 8, 3

    key = jax.random.PRNGKey(0)
    key, kx_i, kx_j = jax.random.split(key, 3)
    x_i = jax.random.normal(kx_i, (N, IN_C), jnp.float32)
    x_j = jax.random.normal(kx_j, (N, IN_C), jnp.float32)

    weights, biases = init_params(key, IN_C, HID_C, OUT_C, NUM_LAYERS)

    out = mlp_cat_predictor(x_i, x_j, weights, biases)
    out = jax.block_until_ready(out)

    ref = _reference(x_i, x_j, weights, biases)
    assert out.shape == (N, OUT_C)
    assert jnp.allclose(out, ref, atol=1e-4, rtol=1e-4), "mismatch vs reference"

    print("KERNEL_OK")
</pallas_src>

<mosaic_0001>
module attributes {stable_mosaic.version = 11 : i64} {
  func.func @_mlp_cat_kernel(%arg0: i32, %arg1: memref<8x16xf32, #tpu.memory_space<vmem>>, %arg2: memref<8x16xf32, #tpu.memory_space<vmem>>, %arg3: memref<16x32xf32, #tpu.memory_space<vmem>>, %arg4: memref<16x32xf32, #tpu.memory_space<vmem>>, %arg5: memref<1x32xf32, #tpu.memory_space<vmem>>, %arg6: memref<32x32xf32, #tpu.memory_space<vmem>>, %arg7: memref<1x32xf32, #tpu.memory_space<vmem>>, %arg8: memref<32x128xf32, #tpu.memory_space<vmem>>, %arg9: memref<1x128xf32, #tpu.memory_space<vmem>>, %arg10: memref<8x128xf32, #tpu.memory_space<vmem>>) attributes {dimension_semantics = [#tpu.dimension_semantics<parallel>], iteration_bounds = array<i64: 2>, scalar_prefetch = 0 : i64, scratch_operands = 0 : i64, tpu.core_type = #tpu.core_type<tc>, window_params = [{transform_indices = @transform_0, window_bounds = array<i64: 8, 16>}, {transform_indices = @transform_1, window_bounds = array<i64: 8, 16>}, {pipeline_mode = #tpu.pipeline_mode<synchronous>, transform_indices = @transform_2, window_bounds = array<i64: 16, 32>}, {pipeline_mode = #tpu.pipeline_mode<synchronous>, transform_indices = @transform_3, window_bounds = array<i64: 16, 32>}, {pipeline_mode = #tpu.pipeline_mode<synchronous>, transform_indices = @transform_4, window_bounds = array<i64: 1, 32>}, {pipeline_mode = #tpu.pipeline_mode<synchronous>, transform_indices = @transform_5, window_bounds = array<i64: 32, 32>}, {pipeline_mode = #tpu.pipeline_mode<synchronous>, transform_indices = @transform_6, window_bounds = array<i64: 1, 32>}, {pipeline_mode = #tpu.pipeline_mode<synchronous>, transform_indices = @transform_7, window_bounds = array<i64: 32, 128>}, {pipeline_mode = #tpu.pipeline_mode<synchronous>, transform_indices = @transform_8, window_bounds = array<i64: 1, 128>}, {transform_indices = @transform_9, window_bounds = array<i64: 8, 128>}]} {
    %c0 = arith.constant 0 : index
    %c0_0 = arith.constant 0 : index
    %0 = vector.load %arg1[%c0, %c0_0] : memref<8x16xf32, #tpu.memory_space<vmem>>, vector<8x16xf32>
    %c0_1 = arith.constant 0 : index
    %c0_2 = arith.constant 0 : index
    %1 = vector.load %arg2[%c0_1, %c0_2] : memref<8x16xf32, #tpu.memory_space<vmem>>, vector<8x16xf32>
    %c0_3 = arith.constant 0 : index
    %c0_4 = arith.constant 0 : index
    %2 = vector.load %arg3[%c0_3, %c0_4] : memref<16x32xf32, #tpu.memory_space<vmem>>, vector<16x32xf32>
    %c0_5 = arith.constant 0 : index
    %c0_6 = arith.constant 0 : index
    %3 = vector.load %arg5[%c0_5, %c0_6] : memref<1x32xf32, #tpu.memory_space<vmem>>, vector<1x32xf32>
    %4 = arith.addf %0, %1 : vector<8x16xf32>
    %cst = arith.constant dense<0.000000e+00> : vector<8x32xf32>
    %5 = tpu.matmul %4, %2, %cst {dimension_numbers = #tpu.dot_dimension_numbers<[1], [0], [0], [1], [0, 0, 1, 1], [], []>} : vector<8x16xf32>, vector<16x32xf32>, vector<8x32xf32> -> vector<8x32xf32>
    %c0_7 = arith.constant 0 : index
    %c0_8 = arith.constant 0 : index
    %6 = vector.load %arg4[%c0_7, %c0_8] : memref<16x32xf32, #tpu.memory_space<vmem>>, vector<16x32xf32>
    %7 = arith.subf %0, %1 : vector<8x16xf32>
    %cst_9 = arith.constant dense<0.000000e+00> : vector<8x32xf32>
    %8 = tpu.matmul %7, %6, %cst_9 {dimension_numbers = #tpu.dot_dimension_numbers<[1], [0], [0], [1], [0, 0, 1, 1], [], []>} : vector<8x16xf32>, vector<16x32xf32>, vector<8x32xf32> -> vector<8x32xf32>
    %9 = arith.addf %5, %8 : vector<8x32xf32>
    %10 = vector.broadcast %3 : vector<1x32xf32> to vector<8x32xf32>
    %11 = arith.addf %9, %10 : vector<8x32xf32>
    %cst_10 = arith.constant 0.000000e+00 : f32
    %12 = vector.broadcast %cst_10 : f32 to vector<8x32xf32>
    %13 = arith.maximumf %11, %12 : vector<8x32xf32>
    %14 = arith.subf %5, %8 : vector<8x32xf32>
    %15 = vector.broadcast %3 : vector<1x32xf32> to vector<8x32xf32>
    %16 = arith.addf %14, %15 : vector<8x32xf32>
    %cst_11 = arith.constant 0.000000e+00 : f32
    %17 = vector.broadcast %cst_11 : f32 to vector<8x32xf32>
    %18 = arith.maximumf %16, %17 : vector<8x32xf32>
    %19 = tpu.concatenate %13, %18 in 0 : vector<8x32xf32>, vector<8x32xf32> -> vector<16x32xf32>
    %c0_12 = arith.constant 0 : index
    %c0_13 = arith.constant 0 : index
    %20 = vector.load %arg6[%c0_12, %c0_13] : memref<32x32xf32, #tpu.memory_space<vmem>>, vector<32x32xf32>
    %c0_14 = arith.constant 0 : index
    %c0_15 = arith.constant 0 : index
    %21 = vector.load %arg7[%c0_14, %c0_15] : memref<1x32xf32, #tpu.memory_space<vmem>>, vector<1x32xf32>
    %cst_16 = arith.constant dense<0.000000e+00> : vector<16x32xf32>
    %22 = tpu.matmul %19, %20, %cst_16 {dimension_numbers = #tpu.dot_dimension_numbers<[1], [0], [0], [1], [0, 0, 1, 1], [], []>} : vector<16x32xf32>, vector<32x32xf32>, vector<16x32xf32> -> vector<16x32xf32>
    %23 = vector.broadcast %21 : vector<1x32xf32> to vector<16x32xf32>
    %24 = arith.addf %22, %23 : vector<16x32xf32>
    %cst_17 = arith.constant 0.000000e+00 : f32
    %25 = vector.broadcast %cst_17 : f32 to vector<16x32xf32>
    %26 = arith.maximumf %24, %25 : vector<16x32xf32>
    %27 = vector.extract_strided_slice %26 {offsets = [0, 0], sizes = [8, 32], strides = [1, 1]} : vector<16x32xf32> to vector<8x32xf32>
    %28 = vector.extract_strided_slice %26 {offsets = [8, 0], sizes = [8, 32], strides = [1, 1]} : vector<16x32xf32> to vector<8x32xf32>
    %c0_18 = arith.constant 0 : index
    %c0_19 = arith.constant 0 : index
    %29 = vector.load %arg8[%c0_18, %c0_19] : memref<32x128xf32, #tpu.memory_space<vmem>>, vector<32x128xf32>
    %c0_20 = arith.constant 0 : index
    %c0_21 = arith.constant 0 : index
    %30 = vector.load %arg9[%c0_20, %c0_21] : memref<1x128xf32, #tpu.memory_space<vmem>>, vector<1x128xf32>
    %31 = arith.addf %27, %28 : vector<8x32xf32>
    %cst_22 = arith.constant 5.000000e-01 : f32
    %32 = vector.broadcast %cst_22 : f32 to vector<8x32xf32>
    %33 = arith.mulf %31, %32 : vector<8x32xf32>
    %cst_23 = arith.constant dense<0.000000e+00> : vector<8x128xf32>
    %34 = tpu.matmul %33, %29, %cst_23 {dimension_numbers = #tpu.dot_dimension_numbers<[1], [0], [0], [1], [0, 0, 1, 1], [], []>} : vector<8x32xf32>, vector<32x128xf32>, vector<8x128xf32> -> vector<8x128xf32>
    %35 = vector.broadcast %30 : vector<1x128xf32> to vector<8x128xf32>
    %36 = arith.addf %34, %35 : vector<8x128xf32>
    %c0_24 = arith.constant 0 : index
    %c0_25 = arith.constant 0 : index
    %37 = vector.load %arg10[%c0_24, %c0_25] : memref<8x128xf32, #tpu.memory_space<vmem>>, vector<8x128xf32>
    tpu.vector_store %arg10[%c0_24, %c0_25], %36 {strides = array<i32>} : memref<8x128xf32, #tpu.memory_space<vmem>>, vector<8x128xf32>,
    return
  }
  func.func @transform_0(%arg0: i32) -> (i32, i32) {
    %c0_i32 = arith.constant 0 : i32
    %c0_i32_0 = arith.constant 0 : i32
    return %arg0, %c0_i32 : i32, i32
  }
  func.func @transform_1(%arg0: i32) -> (i32, i32) {
    %c0_i32 = arith.constant 0 : i32
    %c0_i32_0 = arith.constant 0 : i32
    return %arg0, %c0_i32 : i32, i32
  }
  func.func @transform_2(%arg0: i32) -> (i32, i32) {
    %c0_i32 = arith.constant 0 : i32
    %c0_i32_0 = arith.constant 0 : i32
    %c0_i32_1 = arith.constant 0 : i32
    return %c0_i32, %c0_i32_0 : i32, i32
  }
  func.func @transform_3(%arg0: i32) -> (i32, i32) {
    %c0_i32 = arith.constant 0 : i32
    %c0_i32_0 = arith.constant 0 : i32
    %c0_i32_1 = arith.constant 0 : i32
    return %c0_i32, %c0_i32_0 : i32, i32
  }
  func.func @transform_4(%arg0: i32) -> (i32, i32) {
    %c0_i32 = arith.constant 0 : i32
    %c0_i32_0 = arith.constant 0 : i32
    %c0_i32_1 = arith.constant 0 : i32
    return %c0_i32, %c0_i32_0 : i32, i32
  }
  func.func @transform_5(%arg0: i32) -> (i32, i32) {
    %c0_i32 = arith.constant 0 : i32
    %c0_i32_0 = arith.constant 0 : i32
    %c0_i32_1 = arith.constant 0 : i32
    return %c0_i32, %c0_i32_0 : i32, i32
  }
  func.func @transform_6(%arg0: i32) -> (i32, i32) {
    %c0_i32 = arith.constant 0 : i32
    %c0_i32_0 = arith.constant 0 : i32
    %c0_i32_1 = arith.constant 0 : i32
    return %c0_i32, %c0_i32_0 : i32, i32
  }
  func.func @transform_7(%arg0: i32) -> (i32, i32) {
    %c0_i32 = arith.constant 0 : i32
    %c0_i32_0 = arith.constant 0 : i32
    %c0_i32_1 = arith.constant 0 : i32
    return %c0_i32, %c0_i32_0 : i32, i32
  }
  func.func @transform_8(%arg0: i32) -> (i32, i32) {
    %c0_i32 = arith.constant 0 : i32
    %c0_i32_0 = arith.constant 0 : i32
    %c0_i32_1 = arith.constant 0 : i32
    return %c0_i32, %c0_i32_0 : i32, i32
  }
  func.func @transform_9(%arg0: i32) -> (i32, i32) {
    %c0_i32 = arith.constant 0 : i32
    %c0_i32_0 = arith.constant 0 : i32
    return %arg0, %c0_i32 : i32, i32
  }
}

</mosaic_0001>

<llo_original>
// kernel: tpu_custom_call.1
$region0: #{tpu_custom_call.1}
  #allocation0 [shape = 'u32[]', space=smem, size = 0x4, offset = 0x4, fixed_abs, tag = 'smem constant byte address 0x4 - core index']
  #allocation1 [shape = 'u32[72,128]{1,0:T(1,128)}', space=vmem, size = 0x9000, scoped, tag = 'internal scratch']
  %s0 = inlined_call_operand.hbm [shape: f32[16,16], index: 0, kind: input, shape index: {}]
  %s1 = inlined_call_operand.hbm [shape: f32[16,16], index: 1, kind: input, shape index: {}]
  %s2 = inlined_call_operand.hbm [shape: f32[16,32], index: 2, kind: input, shape index: {}]
  %s3 = inlined_call_operand.hbm [shape: f32[16,32], index: 3, kind: input, shape index: {}]
  %s4 = inlined_call_operand.vmem [shape: f32[1,32], index: 4, kind: input, shape index: {}]
  %s5 = inlined_call_operand.hbm [shape: f32[32,32], index: 5, kind: input, shape index: {}]
  %s6 = inlined_call_operand.vmem [shape: f32[1,32], index: 6, kind: input, shape index: {}]
  %s7 = inlined_call_operand.hbm [shape: f32[32,128], index: 7, kind: input, shape index: {}]
  %s8 = inlined_call_operand.vmem [shape: f32[1,128], index: 8, kind: input, shape index: {}]
  %s9 = inlined_call_operand.hbm [shape: f32[16,128], index: 9, kind: output, shape index: {}]
  %s10 = sld [smem:[#allocation0]]
  $region93: #{tpu_custom_call.1} parent=0
    _
  %s12 = ssub.s32 1, %s10
  %s13 = scalar_select 0, %s12, %s10
  $region1: #{tpu_custom_call.1} parent=0
    #allocation2 [shape = 'u8[8192]{0}', space=vmem, size = 0x2000, scoped, tag = 'input window, operand 0']
    #allocation3 [shape = 's32[2]{0}', space=sflag, size = 0x8, scoped, tag = 'scoped memory for tpu_custom_call.1']
    #allocation4 [shape = 's32[2]{0}', space=sflag, size = 0x8, scoped, tag = 'scoped memory for tpu_custom_call.1']
    #allocation5 [shape = 'u8[8192]{0}', space=vmem, size = 0x2000, scoped, tag = 'input window, operand 1']
    #allocation6 [shape = 's32[2]{0}', space=sflag, size = 0x8, scoped, tag = 'scoped memory for tpu_custom_call.1']
    #allocation7 [shape = 'u8[8192]{0}', space=vmem, size = 0x2000, scoped, tag = 'input window, operand 2, single buffered']
    #allocation8 [shape = 'u8[8192]{0}', space=vmem, size = 0x2000, scoped, tag = 'input window, operand 3, single buffered']
    #allocation9 [shape = 's32[1]{0}', space=sflag, size = 0x4, scoped, tag = 'scoped memory for tpu_custom_call.1']
    #allocation10 [shape = 'u8[16384]{0}', space=vmem, size = 0x4000, scoped, tag = 'input window, operand 5, single buffered']
    #allocation11 [shape = 'u8[16384]{0}', space=vmem, size = 0x4000, scoped, tag = 'input window, operand 7, single buffered']
    #allocation12 [shape = 's32[1]{0}', space=sflag, size = 0x4, scoped, tag = 'scoped memory for tpu_custom_call.1']
    #allocation13 [shape = 'u8[8192]{0}', space=vmem, size = 0x2000, scoped, tag = 'output window, operand 0']
    %14 = vsyncpa [#allocation3], 0
    %s15 = scalar_lea.sflag [#allocation3], 1
    %16 = vsyncpa %s15, 0
    %17 = vsyncpa [#allocation6], 0
    %s18 = scalar_lea.sflag [#allocation6], 1
    %19 = vsyncpa %s18, 0
    %20 = vsyncpa [#allocation9], 0
    %21 = vsyncpa [#allocation12], 0
    %22 = vsyncpa [#allocation4], 0
    %s23 = scalar_lea.sflag [#allocation4], 1
    %24 = vsyncpa %s23, 0
    loop: start=0, step=1, limit=4
    $region2: #{tpu_custom_call.1} parent=1 // loop_pre_header
      _
    $region3: #{tpu_custom_call.1} parent=1 // loop_header
      %s26 = sphi 0, %s30
      %p27 = scmp.ge.s32.totalorder %s26, 4
      %s36 = sphi 0, %s38
      %s39 = sphi 0, %s36
      %s40 = sphi 0, %s39
      %s56 = sphi 0, %s40
      %s62 = sphi 0, %s64
      %s65 = sphi 0, %s62
      %s66 = sphi 0, %s65
      %s82 = sphi 0, %s66
      %s86 = sphi 0, %s86
      %s88 = sphi 0, %s86
      %s89 = sphi 0, %s88
      %s103 = sphi 0, %s89
      %s107 = sphi 0, %s107
      %s109 = sphi 0, %s107
      %s110 = sphi 0, %s109
      %s124 = sphi 0, %s110
      %s128 = sphi 0, %s128
      %s130 = sphi 0, %s128
      %s131 = sphi 0, %s130
      %s145 = sphi 0, %s131
      %s149 = sphi 0, %s149
      %s151 = sphi 0, %s149
      %s152 = sphi 0, %s151
      %s166 = sphi 0, %s152
      %s170 = sphi 0, %s170
      %s172 = sphi 0, %s170
      %s173 = sphi 0, %s172
      %s187 = sphi 0, %s173
      %s191 = sphi 0, %s191
      %s193 = sphi 0, %s191
      %s194 = sphi 0, %s193
      %s208 = sphi 0, %s194
      %s212 = sphi 0, %s212
      %s214 = sphi 0, %s212
      %s215 = sphi 0, %s214
      %s229 = sphi 0, %s215
      %s235 = sphi 0, %s237
      %s238 = sphi 0, %s235
      %s239 = sphi 0, %s238
      %s255 = sphi 0, %s239
    $region4: #{tpu_custom_call.1} parent=1 // loop_header_branch
      %29 = sbr.rel (%p27) target = $region8
    $region5: #{tpu_custom_call.1} parent=1 // loop_body
      %s31 = ssub.s32 %s26, 1
      %s32 = ssub.s32 %s26, 2
      %s33 = sadd.s32 %s26, 1
      %s34 = ssub.s32 %s26, %s33
      %p35 = scmp.eq.s32.totalorder %s34, 0
      %s37 = sadd.s32 %s36, 1
      %s38 = scalar_select %p35, %s36, %s37
      %p41 = pneg %p35
      %p42 = scmp.eq.s32.totalorder %s26, 1
      %p43 = por %p41, %p42
      %p44 = scmp.ne.s32.totalorder %s36, %s39
      %p45 = scmp.eq.s32.totalorder %s26, 0
      %p46 = por %p44, %p45
      %p47 = scmp.ne.s32.totalorder %s36, %s39
      %p48 = scmp.eq.s32.totalorder %s31, 1
      %p49 = por %p47, %p48
      %p50 = scmp.ne.s32.totalorder %s39, %s40
      %p51 = scmp.eq.s32.totalorder %s31, 0
      %p52 = por %p50, %p51
      %p53 = scmp.ne.s32.totalorder %s39, %s40
      %p54 = scmp.eq.s32.totalorder %s32, 1
      %p55 = por %p53, %p54
      %p57 = scmp.ne.s32.totalorder %s40, %s56
      %p58 = scmp.eq.s32.totalorder %s32, 0
      %p59 = por %p57, %p58
      %s60 = ssub.s32 %s26, %s33
      %p61 = scmp.eq.s32.totalorder %s60, 0
      %s63 = sadd.s32 %s62, 1
      %s64 = scalar_select %p61, %s62, %s63
      %p67 = pneg %p61
      %p68 = scmp.eq.s32.totalorder %s26, 1
      %p69 = por %p67, %p68
      %p70 = scmp.ne.s32.totalorder %s62, %s65
      %p71 = scmp.eq.s32.totalorder %s26, 0
      %p72 = por %p70, %p71
      %p73 = scmp.ne.s32.totalorder %s62, %s65
      %p74 = scmp.eq.s32.totalorder %s31, 1
      %p75 = por %p73, %p74
      %p76 = scmp.ne.s32.totalorder %s65, %s66
      %p77 = scmp.eq.s32.totalorder %s31, 0
      %p78 = por %p76, %p77
      %p79 = scmp.ne.s32.totalorder %s65, %s66
      %p80 = scmp.eq.s32.totalorder %s32, 1
      %p81 = por %p79, %p80
      %p83 = scmp.ne.s32.totalorder %s66, %s82
      %p84 = scmp.eq.s32.totalorder %s32, 0
      %p85 = por %p83, %p84
      %s87 = sadd.s32 %s86, 1
      %p90 = scmp.eq.s32.totalorder %s26, 1
      %p91 = scmp.ne.s32.totalorder %s86, %s88
      %p92 = scmp.eq.s32.totalorder %s26, 0
      %p93 = por %p91, %p92
      %p94 = scmp.ne.s32.totalorder %s86, %s88
      %p95 = scmp.eq.s32.totalorder %s31, 1
      %p96 = por %p94, %p95
      %p97 = scmp.ne.s32.totalorder %s88, %s89
      %p98 = scmp.eq.s32.totalorder %s31, 0
      %p99 = por %p97, %p98
      %p100 = scmp.ne.s32.totalorder %s88, %s89
      %p101 = scmp.eq.s32.totalorder %s32, 1
      %p102 = por %p100, %p101
      %p104 = scmp.ne.s32.totalorder %s89, %s103
      %p105 = scmp.eq.s32.totalorder %s32, 0
      %p106 = por %p104, %p105
      %s108 = sadd.s32 %s107, 1
      %p111 = scmp.eq.s32.totalorder %s26, 1
      %p112 = scmp.ne.s32.totalorder %s107, %s109
      %p113 = scmp.eq.s32.totalorder %s26, 0
      %p114 = por %p112, %p113
      %p115 = scmp.ne.s32.totalorder %s107, %s109
      %p116 = scmp.eq.s32.totalorder %s31, 1
      %p117 = por %p115, %p116
      %p118 = scmp.ne.s32.totalorder %s109, %s110
      %p119 = scmp.eq.s32.totalorder %s31, 0
      %p120 = por %p118, %p119
      %p121 = scmp.ne.s32.totalorder %s109, %s110
      %p122 = scmp.eq.s32.totalorder %s32, 1
      %p123 = por %p121, %p122
      %p125 = scmp.ne.s32.totalorder %s110, %s124
      %p126 = scmp.eq.s32.totalorder %s32, 0
      %p127 = por %p125, %p126
      %s129 = sadd.s32 %s128, 1
      %p132 = scmp.eq.s32.totalorder %s26, 1
      %p133 = scmp.ne.s32.totalorder %s128, %s130
      %p134 = scmp.eq.s32.totalorder %s26, 0
      %p135 = por %p133, %p134
      %p136 = scmp.ne.s32.totalorder %s128, %s130
      %p137 = scmp.eq.s32.totalorder %s31, 1
      %p138 = por %p136, %p137
      %p139 = scmp.ne.s32.totalorder %s130, %s131
      %p140 = scmp.eq.s32.totalorder %s31, 0
      %p141 = por %p139, %p140
      %p142 = scmp.ne.s32.totalorder %s130, %s131
      %p143 = scmp.eq.s32.totalorder %s32, 1
      %p144 = por %p142, %p143
      %p146 = scmp.ne.s32.totalorder %s131, %s145
      %p147 = scmp.eq.s32.totalorder %s32, 0
      %p148 = por %p146, %p147
      %s150 = sadd.s32 %s149, 1
      %p153 = scmp.eq.s32.totalorder %s26, 1
      %p154 = scmp.ne.s32.totalorder %s149, %s151
      %p155 = scmp.eq.s32.totalorder %s26, 0
      %p156 = por %p154, %p155
      %p157 = scmp.ne.s32.totalorder %s149, %s151
      %p158 = scmp.eq.s32.totalorder %s31, 1
      %p159 = por %p157, %p158
      %p160 = scmp.ne.s32.totalorder %s151, %s152
      %p161 = scmp.eq.s32.totalorder %s31, 0
      %p162 = por %p160, %p161
      %p163 = scmp.ne.s32.totalorder %s151, %s152
      %p164 = scmp.eq.s32.totalorder %s32, 1
      %p165 = por %p163, %p164
      %p167 = scmp.ne.s32.totalorder %s152, %s166
      %p168 = scmp.eq.s32.totalorder %s32, 0
      %p169 = por %p167, %p168
      %s171 = sadd.s32 %s170, 1
      %p174 = scmp.eq.s32.totalorder %s26, 1
      %p175 = scmp.ne.s32.totalorder %s170, %s172
      %p176 = scmp.eq.s32.totalorder %s26, 0
      %p177 = por %p175, %p176
      %p178 = scmp.ne.s32.totalorder %s170, %s172
      %p179 = scmp.eq.s32.totalorder %s31, 1
      %p180 = por %p178, %p179
      %p181 = scmp.ne.s32.totalorder %s172, %s173
      %p182 = scmp.eq.s32.totalorder %s31, 0
      %p183 = por %p181, %p182
      %p184 = scmp.ne.s32.totalorder %s172, %s173
      %p185 = scmp.eq.s32.totalorder %s32, 1
      %p186 = por %p184, %p185
      %p188 = scmp.ne.s32.totalorder %s173, %s187
      %p189 = scmp.eq.s32.totalorder %s32, 0
      %p190 = por %p188, %p189
      %s192 = sadd.s32 %s191, 1
      %p195 = scmp.eq.s32.totalorder %s26, 1
      %p196 = scmp.ne.s32.totalorder %s191, %s193
      %p197 = scmp.eq.s32.totalorder %s26, 0
      %p198 = por %p196, %p197
      %p199 = scmp.ne.s32.totalorder %s191, %s193
      %p200 = scmp.eq.s32.totalorder %s31, 1
      %p201 = por %p199, %p200
      %p202 = scmp.ne.s32.totalorder %s193, %s194
      %p203 = scmp.eq.s32.totalorder %s31, 0
      %p204 = por %p202, %p203
      %p205 = scmp.ne.s32.totalorder %s193, %s194
      %p206 = scmp.eq.s32.totalorder %s32, 1
      %p207 = por %p205, %p206
      %p209 = scmp.ne.s32.totalorder %s194, %s208
      %p210 = scmp.eq.s32.totalorder %s32, 0
      %p211 = por %p209, %p210
      %s213 = sadd.s32 %s212, 1
      %p216 = scmp.eq.s32.totalorder %s26, 1
      %p217 = scmp.ne.s32.totalorder %s212, %s214
      %p218 = scmp.eq.s32.totalorder %s26, 0
      %p219 = por %p217, %p218
      %p220 = scmp.ne.s32.totalorder %s212, %s214
      %p221 = scmp.eq.s32.totalorder %s31, 1
      %p222 = por %p220, %p221
      %p223 = scmp.ne.s32.totalorder %s214, %s215
      %p224 = scmp.eq.s32.totalorder %s31, 0
      %p225 = por %p223, %p224
      %p226 = scmp.ne.s32.totalorder %s214, %s215
      %p227 = scmp.eq.s32.totalorder %s32, 1
      %p228 = por %p226, %p227
      %p230 = scmp.ne.s32.totalorder %s215, %s229
      %p231 = scmp.eq.s32.totalorder %s32, 0
      %p232 = por %p230, %p231
      %s233 = ssub.s32 %s26, %s33
      %p234 = scmp.eq.s32.totalorder %s233, 0
      %s236 = sadd.s32 %s235, 1
      %s237 = scalar_select %p234, %s235, %s236
      %p240 = pneg %p234
      %p241 = scmp.eq.s32.totalorder %s26, 1
      %p242 = por %p240, %p241
      %p243 = scmp.ne.s32.totalorder %s235, %s238
      %p244 = scmp.eq.s32.totalorder %s26, 0
      %p245 = por %p243, %p244
      %p246 = scmp.ne.s32.totalorder %s235, %s238
      %p247 = scmp.eq.s32.totalorder %s31, 1
      %p248 = por %p246, %p247
      %p249 = scmp.ne.s32.totalorder %s238, %s239
      %p250 = scmp.eq.s32.totalorder %s31, 0
      %p251 = por %p249, %p250
      %p252 = scmp.ne.s32.totalorder %s238, %s239
      %p253 = scmp.eq.s32.totalorder %s32, 1
      %p254 = por %p252, %p253
      %p256 = scmp.ne.s32.totalorder %s239, %s255
      %p257 = scmp.eq.s32.totalorder %s32, 0
      %p258 = por %p256, %p257
      %p259 = scmp.le.s32.totalorder 1, %s26
      %p260 = scmp.lt.s32.totalorder %s26, 3
      %p261 = pnand %p259, %p260
      %p262 = pneg %p261
      // Predicated region
      $region9: #{tpu_custom_call.1} parent=5 // pred_check
        _
      $region10: #{tpu_custom_call.1} parent=5 // pred_check_branch
        %264 = sbr.rel (%p261) target = $region12
      $region11: #{tpu_custom_call.1} parent=5 // pred_region
        %s265 = ssub.s32 %s26, 1
        // Predicated region
        $region13: #{tpu_custom_call.1} parent=11 // pred_check
          %p266 = pneg %p99
        $region14: #{tpu_custom_call.1} parent=11 // pred_check_branch
          %268 = sbr.rel (%p266) target = $region16
        $region15: #{tpu_custom_call.1} parent=11 // pred_region
          %270 = vsyncadd [#allocation6], 0
          %s271 = sshll.u32 %s2, 4
          %s272 = int_to_ptr.hbm [resolvable:$true] %s271
          %s273 = sshll.u32 [#allocation7], 4
          %s274 = int_to_ptr.vmem [resolvable:$true] %s273
          %279 = dma.hbm_to_vmem [thread:$0]  %s272, 256, %s274, [#allocation6], 128, 128, 8
        $region16: #{tpu_custom_call.1} parent=11 // pred_fallthru
          _
        // Predicated region
        $region17: #{tpu_custom_call.1} parent=11 // pred_check
          %p280 = pneg %p120
        $region18: #{tpu_custom_call.1} parent=11 // pred_check_branch
          %282 = sbr.rel (%p280) target = $region20
        $region19: #{tpu_custom_call.1} parent=11 // pred_region
          %284 = vsyncadd [#allocation9], 0
          %s285 = sshll.u32 %s3, 4
          %s286 = int_to_ptr.hbm [resolvable:$true] %s285
          %s287 = sshll.u32 [#allocation8], 4
          %s288 = int_to_ptr.vmem [resolvable:$true] %s287
          %293 = dma.hbm_to_vmem [thread:$0]  %s286, 256, %s288, [#allocation9], 128, 128, 8
        $region20: #{tpu_custom_call.1} parent=11 // pred_fallthru
          _
        // Predicated region
        $region21: #{tpu_custom_call.1} parent=11 // pred_check
          %p294 = pneg %p141
        $region22: #{tpu_custom_call.1} parent=11 // pred_check_branch
          %296 = sbr.rel (%p294) target = $region24
        $region23: #{tpu_custom_call.1} parent=11 // pred_region
          _
        $region24: #{tpu_custom_call.1} parent=11 // pred_fallthru
          _
        // Predicated region
        $region25: #{tpu_custom_call.1} parent=11 // pred_check
          %p297 = pneg %p162
        $region26: #{tpu_custom_call.1} parent=11 // pred_check_branch
          %299 = sbr.rel (%p297) target = $region28
        $region27: #{tpu_custom_call.1} parent=11 // pred_region
          %301 = vsyncadd [#allocation9], 0
          %s302 = sshll.u32 %s5, 4
          %s303 = int_to_ptr.hbm [resolvable:$true] %s302
          %s304 = sshll.u32 [#allocation10], 4
          %s305 = int_to_ptr.vmem [resolvable:$true] %s304
          %310 = dma.hbm_to_vmem [thread:$0]  %s303, 512, %s305, [#allocation9], 128, 128, 8
        $region28: #{tpu_custom_call.1} parent=11 // pred_fallthru
          _
        // Predicated region
        $region29: #{tpu_custom_call.1} parent=11 // pred_check
          %p311 = pneg %p183
        $region30: #{tpu_custom_call.1} parent=11 // pred_check_branch
          %313 = sbr.rel (%p311) target = $region32
        $region31: #{tpu_custom_call.1} parent=11 // pred_region
          _
        $region32: #{tpu_custom_call.1} parent=11 // pred_fallthru
          _
        // Predicated region
        $region33: #{tpu_custom_call.1} parent=11 // pred_check
          %p314 = pneg %p204
        $region34: #{tpu_custom_call.1} parent=11 // pred_check_branch
          %316 = sbr.rel (%p314) target = $region36
        $region35: #{tpu_custom_call.1} parent=11 // pred_region
          %318 = vsyncadd [#allocation12], 0
          %s319 = sshll.u32 %s7, 4
          %s320 = int_to_ptr.hbm [resolvable:$true] %s319
          %s321 = sshll.u32 [#allocation11], 4
          %s322 = int_to_ptr.vmem [resolvable:$true] %s321
          %327 = dma.hbm_to_vmem [thread:$0]  %s320, 512, %s322, [#allocation12], 128, 128, 8
        $region36: #{tpu_custom_call.1} parent=11 // pred_fallthru
          _
        // Predicated region
        $region37: #{tpu_custom_call.1} parent=11 // pred_check
          %p328 = pneg %p225
        $region38: #{tpu_custom_call.1} parent=11 // pred_check_branch
          %330 = sbr.rel (%p328) target = $region40
        $region39: #{tpu_custom_call.1} parent=11 // pred_region
          _
        $region40: #{tpu_custom_call.1} parent=11 // pred_fallthru
          _
      $region12: #{tpu_custom_call.1} parent=5 // pred_fallthru
        _
      %p331 = scmp.lt.s32.totalorder %s26, 2
      // Predicated region
      $region41: #{tpu_custom_call.1} parent=5 // pred_check
        %p332 = pneg %p331
      $region42: #{tpu_custom_call.1} parent=5 // pred_check_branch
        %334 = sbr.rel (%p332) target = $region44
      $region43: #{tpu_custom_call.1} parent=5 // pred_region
        // Predicated region
        $region45: #{tpu_custom_call.1} parent=43 // pred_check
          %p335 = pneg %p46
        $region46: #{tpu_custom_call.1} parent=43 // pred_check_branch
          %337 = sbr.rel (%p335) target = $region48
        $region47: #{tpu_custom_call.1} parent=43 // pred_region
          %s338 = sand.u32 %s36, 1
          %s339 = scalar_lea.sflag [#allocation3], %s338
          %s340 = sand.u32 %s36, 1
          %s341 = smul.addr %s340, 8
          %s342 = scalar_lea.vmem [#allocation2], %s341
          %344 = vsyncadd %s339, 0
          %s345 = smul.addr %s26, 8
          %s346 = scalar_lea.hbm %s0, %s345
          %s348 = sshll.u32 %s346, 4
          %s349 = int_to_ptr.hbm [resolvable:$true] %s348
          %s350 = sshll.u32 %s342, 4
          %s351 = int_to_ptr.vmem [resolvable:$true] %s350
          %353 = dma.hbm_to_vmem [thread:$0]  %s349, 128, %s351, %s339
        $region48: #{tpu_custom_call.1} parent=43 // pred_fallthru
          _
        // Predicated region
        $region49: #{tpu_custom_call.1} parent=43 // pred_check
          %p354 = pneg %p72
        $region50: #{tpu_custom_call.1} parent=43 // pred_check_branch
          %356 = sbr.rel (%p354) target = $region52
        $region51: #{tpu_custom_call.1} parent=43 // pred_region
          %s357 = sand.u32 %s26, 1
          %s358 = scalar_lea.sflag [#allocation6], %s357
          %s359 = sand.u32 %s62, 1
          %s360 = smul.addr %s359, 8
          %s361 = scalar_lea.vmem [#allocation5], %s360
          %363 = vsyncadd %s358, 0
          %s364 = smul.addr %s26, 8
          %s365 = scalar_lea.hbm %s1, %s364
          %s367 = sshll.u32 %s365, 4
          %s368 = int_to_ptr.hbm [resolvable:$true] %s367
          %s369 = sshll.u32 %s361, 4
          %s370 = int_to_ptr.vmem [resolvable:$true] %s369
          %372 = dma.hbm_to_vmem [thread:$0]  %s368, 128, %s370, %s358
        $region52: #{tpu_custom_call.1} parent=43 // pred_fallthru
          _
      $region44: #{tpu_custom_call.1} parent=5 // pred_fallthru
        _
      %p373 = scmp.le.s32.totalorder 1, %s26
      %p374 = scmp.lt.s32.totalorder %s26, 3
      %p375 = pnand %p373, %p374
      %p376 = pneg %p375
      // Predicated region
      $region53: #{tpu_custom_call.1} parent=5 // pred_check
        _
      $region54: #{tpu_custom_call.1} parent=5 // pred_check_branch
        %378 = sbr.rel (%p375) target = $region56
      $region55: #{tpu_custom_call.1} parent=5 // pred_region
        %s379 = ssub.s32 %s26, 1
        %s380 = sand.u32 %s39, 1
        %s381 = scalar_lea.sflag [#allocation3], %s380
        %s382 = sand.u32 %s39, 1
        %s383 = smul.addr %s382, 8
        %s384 = scalar_lea.vmem [#allocation2], %s383
        // Predicated region
        $region57: #{tpu_custom_call.1} parent=55 // pred_check
          %p385 = pneg %p52
        $region58: #{tpu_custom_call.1} parent=55 // pred_check_branch
          %387 = sbr.rel (%p385) target = $region60
        $region59: #{tpu_custom_call.1} parent=55 // pred_region
          %389 = dma.done %s381, 128
        $region60: #{tpu_custom_call.1} parent=55 // pred_fallthru
          _
        %s390 = sand.u32 %s31, 1
        %s391 = scalar_lea.sflag [#allocation6], %s390
        %s392 = sand.u32 %s65, 1
        %s393 = smul.addr %s392, 8
        %s394 = scalar_lea.vmem [#allocation5], %s393
        // Predicated region
        $region61: #{tpu_custom_call.1} parent=55 // pred_check
          %p395 = pneg %p78
        $region62: #{tpu_custom_call.1} parent=55 // pred_check_branch
          %397 = sbr.rel (%p395) target = $region64
        $region63: #{tpu_custom_call.1} parent=55 // pred_region
          %399 = dma.done %s391, 128
        $region64: #{tpu_custom_call.1} parent=55 // pred_fallthru
          _
        // Predicated region
        $region65: #{tpu_custom_call.1} parent=55 // pred_check
          %p400 = pneg %p99
        $region66: #{tpu_custom_call.1} parent=55 // pred_check_branch
          %402 = sbr.rel (%p400) target = $region68
        $region67: #{tpu_custom_call.1} parent=55 // pred_region
          %404 = dma.done [#allocation6], 256
        $region68: #{tpu_custom_call.1} parent=55 // pred_fallthru
          _
        // Predicated region
        $region69: #{tpu_custom_call.1} parent=55 // pred_check
          %p405 = pneg %p120
        $region70: #{tpu_custom_call.1} parent=55 // pred_check_branch
          %407 = sbr.rel (%p405) target = $region72
        $region71: #{tpu_custom_call.1} parent=55 // pred_region
          %409 = dma.done [#allocation9], 256
        $region72: #{tpu_custom_call.1} parent=55 // pred_fallthru
          _
        // Predicated region
        $region73: #{tpu_custom_call.1} parent=55 // pred_check
          %p410 = pneg %p162
        $region74: #{tpu_custom_call.1} parent=55 // pred_check_branch
          %412 = sbr.rel (%p410) target = $region76
        $region75: #{tpu_custom_call.1} parent=55 // pred_region
          %414 = dma.done [#allocation9], 512
        $region76: #{tpu_custom_call.1} parent=55 // pred_fallthru
          _
        // Predicated region
        $region77: #{tpu_custom_call.1} parent=55 // pred_check
          %p415 = pneg %p204
        $region78: #{tpu_custom_call.1} parent=55 // pred_check_branch
          %417 = sbr.rel (%p415) target = $region80
        $region79: #{tpu_custom_call.1} parent=55 // pred_region
          %419 = dma.done [#allocation12], 512
        $region80: #{tpu_custom_call.1} parent=55 // pred_fallthru
          _
        %s420 = sand.u32 %s39, 1
        %s421 = scalar_lea.sflag [#allocation3], %s420
        %s422 = sand.u32 %s39, 1
        %s423 = smul.addr %s422, 8
        %s424 = scalar_lea.vmem [#allocation2], %s423
        %p425 = pneg %p52
        %p426 = pneg %p49
        %s427 = sand.u32 %s31, 1
        %s428 = scalar_lea.sflag [#allocation6], %s427
        %s429 = sand.u32 %s65, 1
        %s430 = smul.addr %s429, 8
        %s431 = scalar_lea.vmem [#allocation5], %s430
        %p432 = pneg %p78
        %p433 = pneg %p75
        %p434 = pneg %p99
        %p435 = pneg %p96
        %p436 = pneg %p120
        %p437 = pneg %p117
        %p438 = pneg %p141
        %p439 = pneg %p138
        %p440 = pneg %p162
        %p441 = pneg %p159
        %p442 = pneg %p183
        %p443 = pneg %p180
        %p444 = pneg %p204
        %p445 = pneg %p201
        %p446 = pneg %p225
        %p447 = pneg %p222
        %p448 = pneg %p251
        %p449 = pneg %p248
        %s450 = sand.u32 %s238, 1
        %s451 = scalar_lea.sflag [#allocation4], %s450
        %s452 = sand.u32 %s238, 1
        %s453 = smul.addr %s452, 8
        %s454 = scalar_lea.vmem [#allocation13], %s453
        %v455 = vld [vmem:[%s384] sm:$0xff]
        %v456 = vld [vmem:[%s394] sm:$0xff]
        %v457 = vld [vmem:[#allocation7] sm:$0xff]
        %v458 = vld [vmem:[#allocation7 + $0x8] sm:$0xff]
        %v459 = vld [vmem:[%s4] sm:$0x1]
        %v460 = vadd.f32 %v455, %v456
        %vm461 = vcmask 130048
        %v463 = vsel %vm461, %v460, 0
        %465 = vmatpush.msra.mxu0 0.0
        %466 = vmatpush.msra.mxu0 0.0
        %467 = vmatpush.msra.mxu0 0.0
        %468 = vmatpush.msra.mxu0 0.0
        %469 = vmatpush.msra.mxu0 0.0
        %470 = vmatpush.msra.mxu0 0.0
        %471 = vmatpush.msra.mxu0 0.0
        %472 = vmatpush.msra.mxu0 0.0
        %473 = vmatpush.msra.mxu0 0.0
        %474 = vmatpush.msra.mxu0 0.0
        %475 = vmatpush.msra.mxu0 0.0
        %476 = vmatpush.msra.mxu0 0.0
        %477 = vmatpush.msra.mxu0 0.0
        %478 = vmatpush.msra.mxu0 0.0
        %479 = vmatpush.msra.mxu0 %v458
        %480 = vmatpush.msra.mxu0 %v457
        %481 = vmatmul.f32.gmra.mxu0 %v463
        %v482 = vpop.f32.mrf.mxu0
        %v483 = vadd.f32 0.0, %v482
        %484 = vdwg.mxu0
        %v485 = vld [vmem:[#allocation8] sm:$0xff]
        %v486 = vld [vmem:[#allocation8 + $0x8] sm:$0xff]
        %v487 = vsub.f32 %v455, %v456
        %v489 = vsel %vm461, %v487, 0
        %491 = vmatpush.msra.mxu0 0.0
        %492 = vmatpush.msra.mxu0 0.0
        %493 = vmatpush.msra.mxu0 0.0
        %494 = vmatpush.msra.mxu0 0.0
        %495 = vmatpush.msra.mxu0 0.0
        %496 = vmatpush.msra.mxu0 0.0
        %497 = vmatpush.msra.mxu0 0.0
        %498 = vmatpush.msra.mxu0 0.0
        %499 = vmatpush.msra.mxu0 0.0
        %500 = vmatpush.msra.mxu0 0.0
        %501 = vmatpush.msra.mxu0 0.0
        %502 = vmatpush.msra.mxu0 0.0
        %503 = vmatpush.msra.mxu0 0.0
        %504 = vmatpush.msra.mxu0 0.0
        %505 = vmatpush.msra.mxu0 %v486
        %506 = vmatpush.msra.mxu0 %v485
        %507 = vmatmul.f32.gmra.mxu0 %v489
        %v508 = vpop.f32.mrf.mxu0
        %v509 = vadd.f32 0.0, %v508
        %510 = vdwg.mxu0
        %v511 = vadd.f32 %v483, %v509
        %v513 = vperm.slane %v459, 0
        %v515 = vadd.f32 %v511, %v513
        %v516 = vmax.f32 %v515, 0.0
        %v517 = vsub.f32 %v483, %v509
        %v518 = vadd.f32 %v517, %v513
        %v519 = vmax.f32 %v518, 0.0
        %v520 = vld [vmem:[#allocation10] sm:$0xff]
        %v521 = vld [vmem:[#allocation10 + $0x8] sm:$0xff]
        %v522 = vld [vmem:[#allocation10 + $0x10] sm:$0xff]
        %v523 = vld [vmem:[#allocation10 + $0x18] sm:$0xff]
        %v524 = vld [vmem:[%s6] sm:$0x1]
        %v526 = vperm.slane %v524, 0
        %vm528 = vcmask 261120
        %v530 = vsel %vm528, %v516, 0
        %v533 = vsel %vm528, %v519, 0
        %535 = vmatpush.msra.mxu0 0.0
        %536 = vmatpush.msra.mxu0 0.0
        %537 = vmatpush.msra.mxu0 0.0
        %538 = vmatpush.msra.mxu0 0.0
        %539 = vmatpush.msra.mxu0 0.0
        %540 = vmatpush.msra.mxu0 0.0
        %541 = vmatpush.msra.mxu0 0.0
        %542 = vmatpush.msra.mxu0 0.0
        %543 = vmatpush.msra.mxu0 0.0
        %544 = vmatpush.msra.mxu0 0.0
        %545 = vmatpush.msra.mxu0 0.0
        %546 = vmatpush.msra.mxu0 0.0
        %547 = vmatpush.msra.mxu0 %v523
        %548 = vmatpush.msra.mxu0 %v522
        %549 = vmatpush.msra.mxu0 %v521
        %550 = vmatpush.msra.mxu0 %v520
        %551 = vmatmul.f32.gmra.mxu0 %v530
        %v552 = vpop.f32.mrf.mxu0
        %v553 = vadd.f32 %v526, %v552
        %554 = vmatmul.f32.gmra.mxu0 %v533
        %v555 = vpop.f32.mrf.mxu0
        %v556 = vadd.f32 %v526, %v555
        %557 = vdwg.mxu0
        %v558 = vmax.f32 %v553, 0.0
        %v559 = vmax.f32 %v556, 0.0
        %v560 = vld [vmem:[#allocation11] sm:$0xff]
        %v561 = vld [vmem:[#allocation11 + $0x8] sm:$0xff]
        %v562 = vld [vmem:[#allocation11 + $0x10] sm:$0xff]
        %v563 = vld [vmem:[#allocation11 + $0x18] sm:$0xff]
        %v564 = vld [vmem:[%s8] sm:$0x1]
        %v565 = vadd.f32 %v558, %v559
        %v566 = vmul.f32 %v565, 0.5
        %v568 = vperm.slane %v564, 0
        %v571 = vsel %vm528, %v566, 0
        %573 = vmatpush.msra.mxu0 0.0
        %574 = vmatpush.msra.mxu0 0.0
        %575 = vmatpush.msra.mxu0 0.0
        %576 = vmatpush.msra.mxu0 0.0
        %577 = vmatpush.msra.mxu0 0.0
        %578 = vmatpush.msra.mxu0 0.0
        %579 = vmatpush.msra.mxu0 0.0
        %580 = vmatpush.msra.mxu0 0.0
        %581 = vmatpush.msra.mxu0 0.0
        %582 = vmatpush.msra.mxu0 0.0
        %583 = vmatpush.msra.mxu0 0.0
        %584 = vmatpush.msra.mxu0 0.0
        %585 = vmatpush.msra.mxu0 %v563
        %586 = vmatpush.msra.mxu0 %v562
        %587 = vmatpush.msra.mxu0 %v561
        %588 = vmatpush.msra.mxu0 %v560
        %589 = vmatmul.f32.gmra.mxu0 %v571
        %v590 = vpop.f32.mrf.mxu0
        %v591 = vadd.f32 %v568, %v590
        %592 = vdwg.mxu0
        %593 = vst [vmem:[%s454] sm:$0xff] %v591
        %s594 = sand.u32 %s238, 1
        %s595 = scalar_lea.sflag [#allocation4], %s594
        %s596 = sand.u32 %s238, 1
        %s597 = smul.addr %s596, 8
        %s598 = scalar_lea.vmem [#allocation13], %s597
        // Predicated region
        $region81: #{tpu_custom_call.1} parent=55 // pred_check
          %p599 = pneg %p248
        $region82: #{tpu_custom_call.1} parent=55 // pred_check_branch
          %601 = sbr.rel (%p599) target = $region84
        $region83: #{tpu_custom_call.1} parent=55 // pred_region
          %603 = vsyncadd %s595, 0
          %s604 = smul.addr %s31, 8
          %s605 = scalar_lea.hbm %s9, %s604
          %s607 = sshll.u32 %s598, 4
          %s608 = int_to_ptr.vmem [resolvable:$true] %s607
          %s609 = sshll.u32 %s605, 4
          %s610 = int_to_ptr.hbm [resolvable:$true] %s609
          %612 = dma.vmem_to_hbm [thread:$0]  %s608, 128, %s610, %s595
        $region84: #{tpu_custom_call.1} parent=55 // pred_fallthru
          _
      $region56: #{tpu_custom_call.1} parent=5 // pred_fallthru
        _
      %p613 = scmp.le.s32.totalorder 2, %s26
      // Predicated region
      $region85: #{tpu_custom_call.1} parent=5 // pred_check
        %p614 = pneg %p613
      $region86: #{tpu_custom_call.1} parent=5 // pred_check_branch
        %616 = sbr.rel (%p614) target = $region88
      $region87: #{tpu_custom_call.1} parent=5 // pred_region
        %s617 = ssub.s32 %s26, 2
        // Predicated region
        $region89: #{tpu_custom_call.1} parent=87 // pred_check
          %p618 = pneg %p254
        $region90: #{tpu_custom_call.1} parent=87 // pred_check_branch
          %620 = sbr.rel (%p618) target = $region92
        $region91: #{tpu_custom_call.1} parent=87 // pred_region
          %s621 = sand.u32 %s239, 1
          %s622 = scalar_lea.sflag [#allocation4], %s621
          %s623 = sand.u32 %s239, 1
          %s624 = smul.addr %s623, 8
          %s625 = scalar_lea.vmem [#allocation13], %s624
          %627 = dma.done %s622, 128
        $region92: #{tpu_custom_call.1} parent=87 // pred_fallthru
          _
      $region88: #{tpu_custom_call.1} parent=5 // pred_fallthru
        _
    $region6: #{tpu_custom_call.1} parent=1 // loop_footer
      %s30 = sadd.s32 1, %s26
    $region7: #{tpu_custom_call.1} parent=1 // loop_footer_branch
      %25 = sbr.rel target = $region3
    $region8: #{tpu_custom_call.1} parent=1 // loop_exit
      _
    %628 = vsyncpa [#allocation3], 1
    %s629 = scalar_lea.sflag [#allocation3], 1
    %630 = vsyncpa %s629, 1
    %631 = vsyncpa [#allocation6], 1
    %s632 = scalar_lea.sflag [#allocation6], 1
    %633 = vsyncpa %s632, 1
    %634 = vsyncpa [#allocation9], 1
    %635 = vsyncpa [#allocation12], 1
    %636 = vsyncpa [#allocation4], 1
    %s637 = scalar_lea.sflag [#allocation4], 1
    %638 = vsyncpa %s637, 1

</llo_original>
